<compile_context>
chip_gen: v5e
topology: v5e:2x2
jax: 0.10.0
libtpu: 0.0.40
codegen_flags: <defaults>
</compile_context>

<pallas_src>
import jax
import jax.numpy as jnp
from jax.experimental import pallas as pl
from jax.experimental.pallas import tpu as pltpu


def fcq_kernel(x_ref, w1_ref, b1_ref, w2_ref, b2_ref, w3_ref, b3_ref, o_ref):
    # Linear -> ReLU -> Linear -> ReLU -> Linear.
    # Input normalization has been folded into w1/b1 in the one-time host prep,
    # so no VPU subtract/divide sits on the critical path.
    # Weights may be bf16 (use_bf16_matmul=True); the LHS is cast to match so the
    # MXU runs bf16-in / f32-accumulate.  Bias add + ReLU stay in f32 (v5e has no
    # bf16 VALU, and it keeps the default path bit-comparable to the reference).
    w1 = w1_ref[...]
    h1 = jnp.dot(x_ref[...].astype(w1.dtype), w1,
                 preferred_element_type=jnp.float32) + b1_ref[...]
    h1 = jnp.maximum(h1, 0.0)
    w2 = w2_ref[...]
    h2 = jnp.dot(h1.astype(w2.dtype), w2,
                 preferred_element_type=jnp.float32) + b2_ref[...]
    h2 = jnp.maximum(h2, 0.0)
    w3 = w3_ref[...]
    out = jnp.dot(h2.astype(w3.dtype), w3,
                  preferred_element_type=jnp.float32) + b3_ref[...]
    o_ref[...] = out.astype(o_ref.dtype)


def prepare_fcq_params(means, stds, params, use_bf16_matmul=False):
    """One-time parameter preprocessing (hoisted off the per-forward critical path).

    Folds (x - means) / stds into the first Linear:
        ((x - m) * s_inv) @ W1 + b1 == x @ (s_inv[:, None] * W1) + (b1 - (m * s_inv) @ W1)
    and reshapes biases to [1, N] rows so they broadcast across the batch tile.
    """
    w1, b1, w2, b2, w3, b3 = params
    hp = jax.lax.Precision.HIGHEST
    inv_std = (1.0 / stds).astype(jnp.float32)
    w1f = w1 * inv_std[:, None]
    b1f = b1 - jnp.dot(means * inv_std, w1, precision=hp)
    if use_bf16_matmul:
        # bf16-in / f32-accumulate: halves weight DMA and hits MXU peak.
        w1f = w1f.astype(jnp.bfloat16)
        w2 = w2.astype(jnp.bfloat16)
        w3 = w3.astype(jnp.bfloat16)
    H = w2.shape[0]
    O = w3.shape[1]
    return (w1f, b1f.reshape(1, H).astype(jnp.float32),
            w2, b2.reshape(1, H).astype(jnp.float32),
            w3, b3.reshape(1, O).astype(jnp.float32))


def _round_up(v, m):
    return ((v + m - 1) // m) * m


def fcq_forward(x, prepared, *, tb_max=2048):
    """x: [B, in_features] f32.  Returns [B, 1, out_features] (matches torch out.unsqueeze(1))."""
    B, F = x.shape
    w1f, b1_2, w2, b2_2, w3, b3_2 = prepared
    O = w3.shape[1]

    # Batch tiling: balanced blocks derived from B (so the padded remainder is
    # < 8 rows), capped at tb_max rows so the per-step payload is large enough
    # to amortize the ~0.35 us per-grid-step overhead while staying well inside
    # every generation's scoped-VMEM default (v5e 16 MiB / v6e,v7x 32 MiB).
    # For mid-size batches force >= 2 blocks so the "parallel" grid axis can be
    # sharded across both TensorCores on megacore parts (v7x).
    nblk = max(1, -(-B // tb_max))
    if B >= 256 and nblk < 2:
        nblk = 2
    TB = _round_up(-(-B // nblk), 8)      # rows per block, multiple of 8 sublanes
    nblk = -(-B // TB)
    Bp = nblk * TB
    if Bp != B:
        x = jnp.pad(x, ((0, Bp - B), (0, 0)))

    # Weights/biases stay VMEM-resident via constant index_maps (they are tiny
    # at arch_dim=128; single-buffering them only matters if arch_dim grows).
    resident = lambda a: pl.BlockSpec(a.shape, lambda i: (0, 0))

    out = pl.pallas_call(
        fcq_kernel,
        out_shape=jax.ShapeDtypeStruct((Bp, O), jnp.float32),
        grid=(nblk,),
        in_specs=[pl.BlockSpec((TB, F), lambda i: (i, 0)),
                  resident(w1f), resident(b1_2),
                  resident(w2), resident(b2_2),
                  resident(w3), resident(b3_2)],
        # Unpadded, full-width output block (block last dim == array last dim):
        # the HBM writeback is exactly the real 4*O bytes per row and no extra
        # XLA slice pass over a 128-lane padded buffer is needed.
        out_specs=pl.BlockSpec((TB, O), lambda i: (i, 0)),
        compiler_params=pltpu.CompilerParams(dimension_semantics=("parallel",)),
    )(x, w1f, b1_2, w2, b2_2, w3, b3_2)

    if Bp != B:
        out = out[:B]
    return out[:, None, :]


def init_params(key, in_features, arch_dim, out_features):
    # Deterministic synthetic weights, stored as [in, out] (transposed vs. torch Linear).
    k = jax.random.split(key, 6)
    scale1 = 1.0 / jnp.sqrt(in_features)
    scale2 = 1.0 / jnp.sqrt(arch_dim)
    w1 = jax.random.uniform(k[0], (in_features, arch_dim), jnp.float32, -scale1, scale1)
    b1 = jax.random.uniform(k[1], (arch_dim,), jnp.float32, -scale1, scale1)
    w2 = jax.random.uniform(k[2], (arch_dim, arch_dim), jnp.float32, -scale2, scale2)
    b2 = jax.random.uniform(k[3], (arch_dim,), jnp.float32, -scale2, scale2)
    w3 = jax.random.uniform(k[4], (arch_dim, out_features), jnp.float32, -scale2, scale2)
    b3 = jax.random.uniform(k[5], (out_features,), jnp.float32, -scale2, scale2)
    return (w1, b1, w2, b2, w3, b3)


def _reference(x, means, stds, params):
    # Pure-JAX reference (explicit normalization, full-precision matmuls).
    w1, b1, w2, b2, w3, b3 = params
    hp = jax.lax.Precision.HIGHEST
    inp = (x - means) / stds
    h1 = jnp.maximum(jnp.dot(inp, w1, precision=hp) + b1, 0.0)
    h2 = jnp.maximum(jnp.dot(h1, w2, precision=hp) + b2, 0.0)
    return (jnp.dot(h2, w3, precision=hp) + b3)[:, None, :]


# TODO(synk): the positional_encoding=True branch (sin/cos over 10 scales) and the
# tcc=True branch (reshape + 1 - vector_norm over arch_dim) are not exercised here;
# the default constructor flags (both False) are implemented.

if __name__ == "__main__":
    in_features = 32
    arch_dim = 128
    out_features = 8

    key = jax.random.PRNGKey(0)
    kx, km, kp, kx2 = jax.random.split(key, 4)

    means = jax.random.normal(km, (in_features,), jnp.float32) * 0.1
    stds = jnp.ones((in_features,), jnp.float32) * 1.5
    params = init_params(kp, in_features, arch_dim, out_features)

    # One-time parameter prep (off the per-forward critical path).
    prepared = prepare_fcq_params(means, stds, params, use_bf16_matmul=False)

    # Case 1: tiny batch (single grid block).
    B = 8
    x = jax.random.normal(kx, (B, in_features), jnp.float32)
    out = jax.block_until_ready(fcq_forward(x, prepared))
    ref = _reference(x, means, stds, params)
    assert out.shape == (B, 1, out_features)
    assert jnp.allclose(out, ref, atol=1e-4, rtol=1e-4)

    # Case 2: batch that exercises multi-block tiling + remainder padding.
    B2 = 300
    x2 = jax.random.normal(kx2, (B2, in_features), jnp.float32)
    out2 = jax.block_until_ready(fcq_forward(x2, prepared))
    ref2 = _reference(x2, means, stds, params)
    assert out2.shape == (B2, 1, out_features)
    assert jnp.allclose(out2, ref2, atol=1e-4, rtol=1e-4)

    print("KERNEL_OK")
</pallas_src>

<mosaic_0001>
module attributes {stable_mosaic.version = 11 : i64} {
  func.func @fcq_kernel(%arg0: i32, %arg1: memref<8x32xf32, #tpu.memory_space<vmem>>, %arg2: memref<32x128xf32, #tpu.memory_space<vmem>>, %arg3: memref<1x128xf32, #tpu.memory_space<vmem>>, %arg4: memref<128x128xf32, #tpu.memory_space<vmem>>, %arg5: memref<1x128xf32, #tpu.memory_space<vmem>>, %arg6: memref<128x8xf32, #tpu.memory_space<vmem>>, %arg7: memref<1x8xf32, #tpu.memory_space<vmem>>, %arg8: memref<8x8xf32, #tpu.memory_space<vmem>>) attributes {dimension_semantics = [#tpu.dimension_semantics<parallel>], iteration_bounds = array<i64: 1>, scalar_prefetch = 0 : i64, scratch_operands = 0 : i64, tpu.core_type = #tpu.core_type<tc>, window_params = [{transform_indices = @transform_0, window_bounds = array<i64: 8, 32>}, {pipeline_mode = #tpu.pipeline_mode<synchronous>, transform_indices = @transform_1, window_bounds = array<i64: 32, 128>}, {pipeline_mode = #tpu.pipeline_mode<synchronous>, transform_indices = @transform_2, window_bounds = array<i64: 1, 128>}, {pipeline_mode = #tpu.pipeline_mode<synchronous>, transform_indices = @transform_3, window_bounds = array<i64: 128, 128>}, {pipeline_mode = #tpu.pipeline_mode<synchronous>, transform_indices = @transform_4, window_bounds = array<i64: 1, 128>}, {pipeline_mode = #tpu.pipeline_mode<synchronous>, transform_indices = @transform_5, window_bounds = array<i64: 128, 8>}, {pipeline_mode = #tpu.pipeline_mode<synchronous>, transform_indices = @transform_6, window_bounds = array<i64: 1, 8>}, {transform_indices = @transform_7, window_bounds = array<i64: 8, 8>}]} {
    %c0 = arith.constant 0 : index
    %c0_0 = arith.constant 0 : index
    %0 = vector.load %arg2[%c0, %c0_0] : memref<32x128xf32, #tpu.memory_space<vmem>>, vector<32x128xf32>
    %c0_1 = arith.constant 0 : index
    %c0_2 = arith.constant 0 : index
    %1 = vector.load %arg1[%c0_1, %c0_2] : memref<8x32xf32, #tpu.memory_space<vmem>>, vector<8x32xf32>
    %cst = arith.constant dense<0.000000e+00> : vector<8x128xf32>
    %2 = tpu.matmul %1, %0, %cst {dimension_numbers = #tpu.dot_dimension_numbers<[1], [0], [0], [1], [0, 0, 1, 1], [], []>} : vector<8x32xf32>, vector<32x128xf32>, vector<8x128xf32> -> vector<8x128xf32>
    %c0_3 = arith.constant 0 : index
    %c0_4 = arith.constant 0 : index
    %3 = vector.load %arg3[%c0_3, %c0_4] : memref<1x128xf32, #tpu.memory_space<vmem>>, vector<1x128xf32>
    %4 = vector.broadcast %3 : vector<1x128xf32> to vector<8x128xf32>
    %5 = arith.addf %2, %4 : vector<8x128xf32>
    %cst_5 = arith.constant 0.000000e+00 : f32
    %6 = vector.broadcast %cst_5 : f32 to vector<8x128xf32>
    %7 = arith.maximumf %5, %6 : vector<8x128xf32>
    %c0_6 = arith.constant 0 : index
    %c0_7 = arith.constant 0 : index
    %8 = vector.load %arg4[%c0_6, %c0_7] : memref<128x128xf32, #tpu.memory_space<vmem>>, vector<128x128xf32>
    %cst_8 = arith.constant dense<0.000000e+00> : vector<8x128xf32>
    %9 = tpu.matmul %7, %8, %cst_8 {dimension_numbers = #tpu.dot_dimension_numbers<[1], [0], [0], [1], [0, 0, 1, 1], [], []>} : vector<8x128xf32>, vector<128x128xf32>, vector<8x128xf32> -> vector<8x128xf32>
    %c0_9 = arith.constant 0 : index
    %c0_10 = arith.constant 0 : index
    %10 = vector.load %arg5[%c0_9, %c0_10] : memref<1x128xf32, #tpu.memory_space<vmem>>, vector<1x128xf32>
    %11 = vector.broadcast %10 : vector<1x128xf32> to vector<8x128xf32>
    %12 = arith.addf %9, %11 : vector<8x128xf32>
    %cst_11 = arith.constant 0.000000e+00 : f32
    %13 = vector.broadcast %cst_11 : f32 to vector<8x128xf32>
    %14 = arith.maximumf %12, %13 : vector<8x128xf32>
    %c0_12 = arith.constant 0 : index
    %c0_13 = arith.constant 0 : index
    %15 = vector.load %arg6[%c0_12, %c0_13] : memref<128x8xf32, #tpu.memory_space<vmem>>, vector<128x8xf32>
    %cst_14 = arith.constant dense<0.000000e+00> : vector<8x8xf32>
    %16 = tpu.matmul %14, %15, %cst_14 {dimension_numbers = #tpu.dot_dimension_numbers<[1], [0], [0], [1], [0, 0, 1, 1], [], []>} : vector<8x128xf32>, vector<128x8xf32>, vector<8x8xf32> -> vector<8x8xf32>
    %c0_15 = arith.constant 0 : index
    %c0_16 = arith.constant 0 : index
    %17 = vector.load %arg7[%c0_15, %c0_16] : memref<1x8xf32, #tpu.memory_space<vmem>>, vector<1x8xf32>
    %18 = vector.broadcast %17 : vector<1x8xf32> to vector<8x8xf32>
    %19 = arith.addf %16, %18 : vector<8x8xf32>
    %c0_17 = arith.constant 0 : index
    %c0_18 = arith.constant 0 : index
    %20 = vector.load %arg8[%c0_17, %c0_18] : memref<8x8xf32, #tpu.memory_space<vmem>>, vector<8x8xf32>
    tpu.vector_store %arg8[%c0_17, %c0_18], %19 {strides = array<i32>} : memref<8x8xf32, #tpu.memory_space<vmem>>, vector<8x8xf32>,
    return
  }
  func.func @transform_0(%arg0: i32) -> (i32, i32) {
    %c0_i32 = arith.constant 0 : i32
    %c0_i32_0 = arith.constant 0 : i32
    return %arg0, %c0_i32 : i32, i32
  }
  func.func @transform_1(%arg0: i32) -> (i32, i32) {
    %c0_i32 = arith.constant 0 : i32
    %c0_i32_0 = arith.constant 0 : i32
    %c0_i32_1 = arith.constant 0 : i32
    return %c0_i32, %c0_i32_0 : i32, i32
  }
  func.func @transform_2(%arg0: i32) -> (i32, i32) {
    %c0_i32 = arith.constant 0 : i32
    %c0_i32_0 = arith.constant 0 : i32
    %c0_i32_1 = arith.constant 0 : i32
    return %c0_i32, %c0_i32_0 : i32, i32
  }
  func.func @transform_3(%arg0: i32) -> (i32, i32) {
    %c0_i32 = arith.constant 0 : i32
    %c0_i32_0 = arith.constant 0 : i32
    %c0_i32_1 = arith.constant 0 : i32
    return %c0_i32, %c0_i32_0 : i32, i32
  }
  func.func @transform_4(%arg0: i32) -> (i32, i32) {
    %c0_i32 = arith.constant 0 : i32
    %c0_i32_0 = arith.constant 0 : i32
    %c0_i32_1 = arith.constant 0 : i32
    return %c0_i32, %c0_i32_0 : i32, i32
  }
  func.func @transform_5(%arg0: i32) -> (i32, i32) {
    %c0_i32 = arith.constant 0 : i32
    %c0_i32_0 = arith.constant 0 : i32
    %c0_i32_1 = arith.constant 0 : i32
    return %c0_i32, %c0_i32_0 : i32, i32
  }
  func.func @transform_6(%arg0: i32) -> (i32, i32) {
    %c0_i32 = arith.constant 0 : i32
    %c0_i32_0 = arith.constant 0 : i32
    %c0_i32_1 = arith.constant 0 : i32
    return %c0_i32, %c0_i32_0 : i32, i32
  }
  func.func @transform_7(%arg0: i32) -> (i32, i32) {
    %c0_i32 = arith.constant 0 : i32
    %c0_i32_0 = arith.constant 0 : i32
    return %arg0, %c0_i32 : i32, i32
  }
}

</mosaic_0001>

<llo_original>
// kernel: tpu_custom_call.1
$region0: #{tpu_custom_call.1}
  #allocation0 [shape = 'u32[]', space=smem, size = 0x4, offset = 0x4, fixed_abs, tag = 'smem constant byte address 0x4 - core index']
  #allocation1 [shape = 'u32[72,128]{1,0:T(1,128)}', space=vmem, size = 0x9000, scoped, tag = 'internal scratch']
  %s0 = inlined_call_operand.vmem [shape: f32[8,32], index: 0, kind: input, shape index: {}]
  %s1 = inlined_call_operand.hbm [shape: f32[32,128], index: 1, kind: input, shape index: {}]
  %s2 = inlined_call_operand.vmem [shape: f32[1,128], index: 2, kind: input, shape index: {}]
  %s3 = inlined_call_operand.vmem [shape: f32[128,128], index: 3, kind: input, shape index: {}]
  %s4 = inlined_call_operand.vmem [shape: f32[1,128], index: 4, kind: input, shape index: {}]
  %s5 = inlined_call_operand.vmem [shape: f32[128,8], index: 5, kind: input, shape index: {}]
  %s6 = inlined_call_operand.vmem [shape: f32[1,8], index: 6, kind: input, shape index: {}]
  %s7 = inlined_call_operand.hbm [shape: f32[8,8], index: 7, kind: output, shape index: {}]
  %s8 = sld [smem:[#allocation0]]
  $region42: #{tpu_custom_call.1} parent=0
    _
  %s10 = ssub.s32 1, %s8
  %s11 = scalar_select 0, %s10, %s8
  $region1: #{tpu_custom_call.1} parent=0
    #allocation2 [shape = 'u8[16384]{0}', space=vmem, size = 0x4000, scoped, tag = 'input window, operand 1, single buffered']
    #allocation3 [shape = 's32[1]{0}', space=sflag, size = 0x4, scoped, tag = 'scoped memory for tpu_custom_call.1']
    #allocation4 [shape = 's32[1]{0}', space=sflag, size = 0x4, scoped, tag = 'scoped memory for tpu_custom_call.1']
    #allocation5 [shape = 'u8[4096]{0}', space=vmem, size = 0x1000, scoped, tag = 'output window, operand 0, single buffered']
    %12 = vsyncpa [#allocation3], 0
    %13 = vsyncpa [#allocation4], 0
    // Predicated region
    $region2: #{tpu_custom_call.1} parent=1 // pred_check
      _
    $region3: #{tpu_custom_call.1} parent=1 // pred_check_branch
      %15 = sbr.rel (0) target = $region5
    $region4: #{tpu_custom_call.1} parent=1 // pred_region
      _
    $region5: #{tpu_custom_call.1} parent=1 // pred_fallthru
      _
    // Predicated region
    $region6: #{tpu_custom_call.1} parent=1 // pred_check
      _
    $region7: #{tpu_custom_call.1} parent=1 // pred_check_branch
      %17 = sbr.rel (0) target = $region9
    $region8: #{tpu_custom_call.1} parent=1 // pred_region
      %19 = vsyncadd [#allocation3], 0
      %s20 = sshll.u32 %s1, 4
      %s21 = int_to_ptr.hbm [resolvable:$true] %s20
      %s22 = sshll.u32 [#allocation2], 4
      %s23 = int_to_ptr.vmem [resolvable:$true] %s22
      %28 = dma.hbm_to_vmem [thread:$0]  %s21, 512, %s23, [#allocation3], 128, 128, 8
    $region9: #{tpu_custom_call.1} parent=1 // pred_fallthru
      _
    // Predicated region
    $region10: #{tpu_custom_call.1} parent=1 // pred_check
      _
    $region11: #{tpu_custom_call.1} parent=1 // pred_check_branch
      %30 = sbr.rel (0) target = $region13
    $region12: #{tpu_custom_call.1} parent=1 // pred_region
      _
    $region13: #{tpu_custom_call.1} parent=1 // pred_fallthru
      _
    // Predicated region
    $region14: #{tpu_custom_call.1} parent=1 // pred_check
      _
    $region15: #{tpu_custom_call.1} parent=1 // pred_check_branch
      %32 = sbr.rel (0) target = $region17
    $region16: #{tpu_custom_call.1} parent=1 // pred_region
      _
    $region17: #{tpu_custom_call.1} parent=1 // pred_fallthru
      _
    // Predicated region
    $region18: #{tpu_custom_call.1} parent=1 // pred_check
      _
    $region19: #{tpu_custom_call.1} parent=1 // pred_check_branch
      %34 = sbr.rel (0) target = $region21
    $region20: #{tpu_custom_call.1} parent=1 // pred_region
      _
    $region21: #{tpu_custom_call.1} parent=1 // pred_fallthru
      _
    // Predicated region
    $region22: #{tpu_custom_call.1} parent=1 // pred_check
      _
    $region23: #{tpu_custom_call.1} parent=1 // pred_check_branch
      %36 = sbr.rel (0) target = $region25
    $region24: #{tpu_custom_call.1} parent=1 // pred_region
      _
    $region25: #{tpu_custom_call.1} parent=1 // pred_fallthru
      _
    // Predicated region
    $region26: #{tpu_custom_call.1} parent=1 // pred_check
      _
    $region27: #{tpu_custom_call.1} parent=1 // pred_check_branch
      %38 = sbr.rel (0) target = $region29
    $region28: #{tpu_custom_call.1} parent=1 // pred_region
      _
    $region29: #{tpu_custom_call.1} parent=1 // pred_fallthru
      _
    // Predicated region
    $region30: #{tpu_custom_call.1} parent=1 // pred_check
      _
    $region31: #{tpu_custom_call.1} parent=1 // pred_check_branch
      %40 = sbr.rel (0) target = $region33
    $region32: #{tpu_custom_call.1} parent=1 // pred_region
      %42 = dma.done [#allocation3], 512
    $region33: #{tpu_custom_call.1} parent=1 // pred_fallthru
      _
    %v43 = vld [vmem:[#allocation2] sm:$0xff]
    %v44 = vld [vmem:[#allocation2 + $0x8] sm:$0xff]
    %v45 = vld [vmem:[#allocation2 + $0x10] sm:$0xff]
    %v46 = vld [vmem:[#allocation2 + $0x18] sm:$0xff]
    %v47 = vld [vmem:[%s0] sm:$0xff]
    %v48 = vld [vmem:[%s2] sm:$0x1]
    %v50 = vperm.slane %v48, 0
    %vm52 = vcmask 261120
    %v54 = vsel %vm52, %v47, 0
    %56 = vmatpush.msra.mxu0 0.0
    %57 = vmatpush.msra.mxu0 0.0
    %58 = vmatpush.msra.mxu0 0.0
    %59 = vmatpush.msra.mxu0 0.0
    %60 = vmatpush.msra.mxu0 0.0
    %61 = vmatpush.msra.mxu0 0.0
    %62 = vmatpush.msra.mxu0 0.0
    %63 = vmatpush.msra.mxu0 0.0
    %64 = vmatpush.msra.mxu0 0.0
    %65 = vmatpush.msra.mxu0 0.0
    %66 = vmatpush.msra.mxu0 0.0
    %67 = vmatpush.msra.mxu0 0.0
    %68 = vmatpush.msra.mxu0 %v46
    %69 = vmatpush.msra.mxu0 %v45
    %70 = vmatpush.msra.mxu0 %v44
    %71 = vmatpush.msra.mxu0 %v43
    %72 = vmatmul.f32.gmra.mxu0 %v54
    %v73 = vpop.f32.mrf.mxu0
    %v74 = vadd.f32 %v50, %v73
    %75 = vdwg.mxu0
    %v76 = vmax.f32 %v74, 0.0
    %v77 = vld [vmem:[%s3] sm:$0xff]
    %v78 = vld [vmem:[%s3 + $0x8] sm:$0xff]
    %v79 = vld [vmem:[%s3 + $0x10] sm:$0xff]
    %v80 = vld [vmem:[%s3 + $0x18] sm:$0xff]
    %v81 = vld [vmem:[%s3 + $0x20] sm:$0xff]
    %v82 = vld [vmem:[%s3 + $0x28] sm:$0xff]
    %v83 = vld [vmem:[%s3 + $0x30] sm:$0xff]
    %v84 = vld [vmem:[%s3 + $0x38] sm:$0xff]
    %v85 = vld [vmem:[%s3 + $0x40] sm:$0xff]
    %v86 = vld [vmem:[%s3 + $0x48] sm:$0xff]
    %v87 = vld [vmem:[%s3 + $0x50] sm:$0xff]
    %v88 = vld [vmem:[%s3 + $0x58] sm:$0xff]
    %v89 = vld [vmem:[%s3 + $0x60] sm:$0xff]
    %v90 = vld [vmem:[%s3 + $0x68] sm:$0xff]
    %v91 = vld [vmem:[%s3 + $0x70] sm:$0xff]
    %v92 = vld [vmem:[%s3 + $0x78] sm:$0xff]
    %v93 = vld [vmem:[%s4] sm:$0x1]
    %v95 = vperm.slane %v93, 0
    %97 = vmatpush.msra.mxu0 %v92
    %98 = vmatpush.msra.mxu0 %v91
    %99 = vmatpush.msra.mxu0 %v90
    %100 = vmatpush.msra.mxu0 %v89
    %101 = vmatpush.msra.mxu0 %v88
    %102 = vmatpush.msra.mxu0 %v87
    %103 = vmatpush.msra.mxu0 %v86
    %104 = vmatpush.msra.mxu0 %v85
    %105 = vmatpush.msra.mxu0 %v84
    %106 = vmatpush.msra.mxu0 %v83
    %107 = vmatpush.msra.mxu0 %v82
    %108 = vmatpush.msra.mxu0 %v81
    %109 = vmatpush.msra.mxu0 %v80
    %110 = vmatpush.msra.mxu0 %v79
    %111 = vmatpush.msra.mxu0 %v78
    %112 = vmatpush.msra.mxu0 %v77
    %113 = vmatmul.f32.gmra.mxu0 %v76
    %v114 = vpop.f32.mrf.mxu0
    %v115 = vadd.f32 %v95, %v114
    %116 = vdwg.mxu0
    %v117 = vmax.f32 %v115, 0.0
    %v118 = vld [vmem:[%s5] sm:$0xff]
    %v119 = vld [vmem:[%s5 + $0x8] sm:$0xff]
    %v120 = vld [vmem:[%s5 + $0x10] sm:$0xff]
    %v121 = vld [vmem:[%s5 + $0x18] sm:$0xff]
    %v122 = vld [vmem:[%s5 + $0x20] sm:$0xff]
    %v123 = vld [vmem:[%s5 + $0x28] sm:$0xff]
    %v124 = vld [vmem:[%s5 + $0x30] sm:$0xff]
    %v125 = vld [vmem:[%s5 + $0x38] sm:$0xff]
    %v126 = vld [vmem:[%s5 + $0x40] sm:$0xff]
    %v127 = vld [vmem:[%s5 + $0x48] sm:$0xff]
    %v128 = vld [vmem:[%s5 + $0x50] sm:$0xff]
    %v129 = vld [vmem:[%s5 + $0x58] sm:$0xff]
    %v130 = vld [vmem:[%s5 + $0x60] sm:$0xff]
    %v131 = vld [vmem:[%s5 + $0x68] sm:$0xff]
    %v132 = vld [vmem:[%s5 + $0x70] sm:$0xff]
    %v133 = vld [vmem:[%s5 + $0x78] sm:$0xff]
    %v134 = vld [vmem:[%s6] sm:$0x1]
    %v136 = vperm.slane %v134, 0
    %138 = vmatpush.msra.mxu0 %v133
    %139 = vmatpush.msra.mxu0 %v132
    %140 = vmatpush.msra.mxu0 %v131
    %141 = vmatpush.msra.mxu0 %v130
    %142 = vmatpush.msra.mxu0 %v129
    %143 = vmatpush.msra.mxu0 %v128
    %144 = vmatpush.msra.mxu0 %v127
    %145 = vmatpush.msra.mxu0 %v126
    %146 = vmatpush.msra.mxu0 %v125
    %147 = vmatpush.msra.mxu0 %v124
    %148 = vmatpush.msra.mxu0 %v123
    %149 = vmatpush.msra.mxu0 %v122
    %150 = vmatpush.msra.mxu0 %v121
    %151 = vmatpush.msra.mxu0 %v120
    %152 = vmatpush.msra.mxu0 %v119
    %153 = vmatpush.msra.mxu0 %v118
    %154 = vmatmul.f32.gmra.mxu0 %v117
    %v155 = vpop.f32.mrf.mxu0
    %v156 = vadd.f32 %v136, %v155
    %157 = vdwg.mxu0
    %vm158 = vcmask 64512
    %159 = vst.msk [vmem:[#allocation5] sm:$0xff] %vm158, %v156
    // Predicated region
    $region34: #{tpu_custom_call.1} parent=1 // pred_check
      _
    $region35: #{tpu_custom_call.1} parent=1 // pred_check_branch
      %161 = sbr.rel (0) target = $region37
    $region36: #{tpu_custom_call.1} parent=1 // pred_region
      %163 = vsyncadd [#allocation4], 0
      %s165 = sshll.u32 [#allocation5], 4
      %s166 = int_to_ptr.vmem [resolvable:$true] %s165
      %s167 = sshll.u32 %s7, 4
      %s168 = int_to_ptr.hbm [resolvable:$true] %s167
      %170 = dma.vmem_to_hbm [thread:$0]  %s166, 128, %s168, [#allocation4]
    $region37: #{tpu_custom_call.1} parent=1 // pred_fallthru
      _
    // Predicated region
    $region38: #{tpu_custom_call.1} parent=1 // pred_check
      _
    $region39: #{tpu_custom_call.1} parent=1 // pred_check_branch
      %172 = sbr.rel (0) target = $region41
    $region40: #{tpu_custom_call.1} parent=1 // pred_region
      %174 = dma.done [#allocation4], 128
    $region41: #{tpu_custom_call.1} parent=1 // pred_fallthru
      _
    %175 = vsyncpa [#allocation3], 1
    %176 = vsyncpa [#allocation4], 1

</llo_original>
